<compile_context>
chip_gen: v7x
topology: tpu7x:2x2x1
jax: 0.10.0
libtpu: 0.0.40
codegen_flags: <defaults>
</compile_context>

<pallas_src>
import functools

import jax
import jax.numpy as jnp
from jax.experimental import pallas as pl
from jax.experimental.pallas import tpu as pltpu

FEAT_DIM = 1024
HIDDEN = 128


def _round_up(x, m):
    return ((x + m - 1) // m) * m


def _cdiv(a, b):
    return -(-a // b)


def _disc_kernel(x_ref, w1_ref, b1_ref, w2_ref, b2_ref, o_ref):
    # x_ref:  (bm, FEAT_DIM)      compute dtype (f32 or bf16)
    # w1_ref: (FEAT_DIM, HIDDEN)  compute dtype
    # b1_ref: (1, HIDDEN)         f32
    # w2_ref: (HIDDEN, out_num)   compute dtype
    # b2_ref: (1, out_num)        f32
    # o_ref:  (bm, out_num)       compute dtype
    h = jnp.dot(x_ref[...], w1_ref[...], preferred_element_type=jnp.float32)
    h = jnp.maximum(h + b1_ref[...], 0.0)                    # Linear1 + ReLU
    out = jnp.dot(h.astype(w2_ref.dtype), w2_ref[...],
                  preferred_element_type=jnp.float32)
    o_ref[...] = (out + b2_ref[...]).astype(o_ref.dtype)     # Linear2


@functools.partial(jax.jit, static_argnames=("block_m",))
def discriminator_forward(features, w1, b1, w2, b2, *, block_m=None):
    """features: [B, 1024] (f32 or bf16). Returns [B, out_num] in features.dtype.

    w1: [1024, 128] ([in, out], transposed from PyTorch's [128, 1024]),
    b1: [128], w2: [128, out_num], b2: [out_num].
    """
    B, feat = features.shape
    assert feat == FEAT_DIM
    out_num = w2.shape[1]

    cdt = features.dtype                        # MXU compute dtype
    itemsize = jnp.dtype(cdt).itemsize
    sub = 16 if itemsize == 2 else 8            # native sublane tile

    if block_m is None:
        block_m = 2048 if itemsize == 2 else 1024

    # ---- batch tile selection: no padding of `features`; Pallas handles the
    # ragged last block (OOB reads unspecified, OOB writes dropped).
    bm = min(_round_up(block_m, sub), _round_up(B, sub))
    # v7x megacore: ensure >=2 grid steps whenever the batch supports two
    # >=128-row tiles, so the "parallel" axis shards across both TensorCores.
    if B >= 256 and _cdiv(B, bm) < 2:
        bm = max(128, _round_up(_cdiv(B, 2), sub))
    grid = (_cdiv(B, bm),)

    # Weights follow the compute dtype (bf16 halves the resident-weight DMA);
    # biases stay f32 and are added to the f32 MXU accumulator.
    w1c = w1.astype(cdt)
    w2c = w2.astype(cdt)
    b1_2d = b1.reshape(1, HIDDEN).astype(jnp.float32)
    b2_2d = b2.reshape(1, out_num).astype(jnp.float32)

    # Scoped VMEM budget: double-buffered x/out tiles + resident weights + slack.
    x_tile = bm * FEAT_DIM * itemsize
    o_tile = bm * out_num * itemsize
    w_bytes = (FEAT_DIM * HIDDEN + HIDDEN * out_num) * itemsize \
        + (HIDDEN + out_num) * 4
    vmem_limit = min(48 << 20,
                     max(16 << 20, 2 * (x_tile + o_tile + w_bytes) + (8 << 20)))

    return pl.pallas_call(
        _disc_kernel,
        out_shape=jax.ShapeDtypeStruct((B, out_num), cdt),
        grid_spec=pltpu.PrefetchScalarGridSpec(
            num_scalar_prefetch=0,
            grid=grid,
            in_specs=[
                pl.BlockSpec((bm, FEAT_DIM), lambda i: (i, 0)),      # x tile
                pl.BlockSpec((FEAT_DIM, HIDDEN), lambda i: (0, 0)),  # w1 resident
                pl.BlockSpec((1, HIDDEN), lambda i: (0, 0)),         # b1
                pl.BlockSpec((HIDDEN, out_num), lambda i: (0, 0)),   # w2 resident
                pl.BlockSpec((1, out_num), lambda i: (0, 0)),        # b2
            ],
            out_specs=pl.BlockSpec((bm, out_num), lambda i: (i, 0)),
        ),
        compiler_params=pltpu.CompilerParams(
            dimension_semantics=("parallel",),
            vmem_limit_bytes=vmem_limit,
        ),
    )(features, w1c, b1_2d, w2c, b2_2d)


def init_discriminator_params(key, out_num):
    """Deterministic PyTorch-style init: U(-1/sqrt(fan_in), 1/sqrt(fan_in))."""
    k1, k2, k3, k4 = jax.random.split(key, 4)
    bound1 = 1.0 / jnp.sqrt(FEAT_DIM)
    bound2 = 1.0 / jnp.sqrt(HIDDEN)
    # Stored in [in, out] layout (transpose of PyTorch's [out, in]) so the
    # kernel can matmul directly.
    w1 = jax.random.uniform(k1, (FEAT_DIM, HIDDEN), jnp.float32, -bound1, bound1)
    b1 = jax.random.uniform(k2, (HIDDEN,), jnp.float32, -bound1, bound1)
    w2 = jax.random.uniform(k3, (HIDDEN, out_num), jnp.float32, -bound2, bound2)
    b2 = jax.random.uniform(k4, (out_num,), jnp.float32, -bound2, bound2)
    return w1, b1, w2, b2


if __name__ == "__main__":
    key = jax.random.PRNGKey(0)
    out_num = 10

    k_params, k_x, k_big = jax.random.split(key, 3)
    w1, b1, w2, b2 = init_discriminator_params(k_params, out_num)

    def ref_fwd(x):
        return jnp.maximum(x @ w1 + b1, 0.0) @ w2 + b2

    # f32 path, small batch (single block).
    feats = jax.random.normal(k_x, (16, FEAT_DIM), jnp.float32)
    ref = ref_fwd(feats)
    out = jax.block_until_ready(discriminator_forward(feats, w1, b1, w2, b2))
    assert out.shape == (16, out_num) and out.dtype == jnp.float32
    assert jnp.allclose(out, ref, atol=1e-4, rtol=1e-4)

    # Non-multiple-of-8 batch: exercises the ragged (partial) block path.
    out13 = jax.block_until_ready(
        discriminator_forward(feats[:13], w1, b1, w2, b2))
    assert out13.shape == (13, out_num)
    assert jnp.allclose(out13, ref[:13], atol=1e-4, rtol=1e-4)

    # Larger batch: multi-step grid (megacore split) + ragged last block.
    feats_big = jax.random.normal(k_big, (300, FEAT_DIM), jnp.float32)
    ref_big = ref_fwd(feats_big)
    out_big = jax.block_until_ready(
        discriminator_forward(feats_big, w1, b1, w2, b2))
    assert out_big.shape == (300, out_num)
    assert jnp.allclose(out_big, ref_big, atol=1e-4, rtol=1e-4)

    # bf16 activations streamed from HBM (halves the dominant DMA stream);
    # weights cast to bf16, f32 MXU accumulation, bf16 output.
    feats_bf16 = feats.astype(jnp.bfloat16)
    out_bf16 = jax.block_until_ready(
        discriminator_forward(feats_bf16, w1, b1, w2, b2))
    assert out_bf16.shape == (16, out_num) and out_bf16.dtype == jnp.bfloat16
    assert jnp.allclose(out_bf16.astype(jnp.float32), ref, atol=5e-2, rtol=5e-2)

    print("KERNEL_OK")
</pallas_src>

<mosaic_0001>
module attributes {stable_mosaic.version = 11 : i64} {
  func.func @_disc_kernel(%arg0: i32, %arg1: memref<16x1024xf32, #tpu.memory_space<vmem>>, %arg2: memref<1024x128xf32, #tpu.memory_space<vmem>>, %arg3: memref<1x128xf32, #tpu.memory_space<vmem>>, %arg4: memref<128x10xf32, #tpu.memory_space<vmem>>, %arg5: memref<1x10xf32, #tpu.memory_space<vmem>>, %arg6: memref<16x10xf32, #tpu.memory_space<vmem>>) attributes {dimension_semantics = [#tpu.dimension_semantics<parallel>], iteration_bounds = array<i64: 1>, scalar_prefetch = 0 : i64, scratch_operands = 0 : i64, tpu.core_type = #tpu.core_type<tc>, window_params = [{transform_indices = @transform_0, window_bounds = array<i64: 16, 1024>}, {pipeline_mode = #tpu.pipeline_mode<synchronous>, transform_indices = @transform_1, window_bounds = array<i64: 1024, 128>}, {pipeline_mode = #tpu.pipeline_mode<synchronous>, transform_indices = @transform_2, window_bounds = array<i64: 1, 128>}, {pipeline_mode = #tpu.pipeline_mode<synchronous>, transform_indices = @transform_3, window_bounds = array<i64: 128, 10>}, {pipeline_mode = #tpu.pipeline_mode<synchronous>, transform_indices = @transform_4, window_bounds = array<i64: 1, 10>}, {transform_indices = @transform_5, window_bounds = array<i64: 16, 10>}]} {
    %c0 = arith.constant 0 : index
    %c0_0 = arith.constant 0 : index
    %0 = vector.load %arg1[%c0, %c0_0] : memref<16x1024xf32, #tpu.memory_space<vmem>>, vector<16x1024xf32>
    %c0_1 = arith.constant 0 : index
    %c0_2 = arith.constant 0 : index
    %1 = vector.load %arg2[%c0_1, %c0_2] : memref<1024x128xf32, #tpu.memory_space<vmem>>, vector<1024x128xf32>
    %cst = arith.constant dense<0.000000e+00> : vector<16x128xf32>
    %2 = tpu.matmul %0, %1, %cst {dimension_numbers = #tpu.dot_dimension_numbers<[1], [0], [0], [1], [0, 0, 1, 1], [], []>} : vector<16x1024xf32>, vector<1024x128xf32>, vector<16x128xf32> -> vector<16x128xf32>
    %c0_3 = arith.constant 0 : index
    %c0_4 = arith.constant 0 : index
    %3 = vector.load %arg3[%c0_3, %c0_4] : memref<1x128xf32, #tpu.memory_space<vmem>>, vector<1x128xf32>
    %4 = vector.broadcast %3 : vector<1x128xf32> to vector<16x128xf32>
    %5 = arith.addf %2, %4 : vector<16x128xf32>
    %cst_5 = arith.constant 0.000000e+00 : f32
    %6 = vector.broadcast %cst_5 : f32 to vector<16x128xf32>
    %7 = arith.maximumf %5, %6 : vector<16x128xf32>
    %c0_6 = arith.constant 0 : index
    %c0_7 = arith.constant 0 : index
    %8 = vector.load %arg4[%c0_6, %c0_7] : memref<128x10xf32, #tpu.memory_space<vmem>>, vector<128x10xf32>
    %cst_8 = arith.constant dense<0.000000e+00> : vector<16x10xf32>
    %9 = tpu.matmul %7, %8, %cst_8 {dimension_numbers = #tpu.dot_dimension_numbers<[1], [0], [0], [1], [0, 0, 1, 1], [], []>} : vector<16x128xf32>, vector<128x10xf32>, vector<16x10xf32> -> vector<16x10xf32>
    %c0_9 = arith.constant 0 : index
    %c0_10 = arith.constant 0 : index
    %10 = vector.load %arg5[%c0_9, %c0_10] : memref<1x10xf32, #tpu.memory_space<vmem>>, vector<1x10xf32>
    %11 = vector.broadcast %10 : vector<1x10xf32> to vector<16x10xf32>
    %12 = arith.addf %9, %11 : vector<16x10xf32>
    %c0_11 = arith.constant 0 : index
    %c0_12 = arith.constant 0 : index
    %13 = vector.load %arg6[%c0_11, %c0_12] : memref<16x10xf32, #tpu.memory_space<vmem>>, vector<16x10xf32>
    tpu.vector_store %arg6[%c0_11, %c0_12], %12 {strides = array<i32>} : memref<16x10xf32, #tpu.memory_space<vmem>>, vector<16x10xf32>,
    return
  }
  func.func @transform_0(%arg0: i32) -> (i32, i32) {
    %c0_i32 = arith.constant 0 : i32
    %c0_i32_0 = arith.constant 0 : i32
    return %arg0, %c0_i32 : i32, i32
  }
  func.func @transform_1(%arg0: i32) -> (i32, i32) {
    %c0_i32 = arith.constant 0 : i32
    %c0_i32_0 = arith.constant 0 : i32
    %c0_i32_1 = arith.constant 0 : i32
    return %c0_i32, %c0_i32_0 : i32, i32
  }
  func.func @transform_2(%arg0: i32) -> (i32, i32) {
    %c0_i32 = arith.constant 0 : i32
    %c0_i32_0 = arith.constant 0 : i32
    %c0_i32_1 = arith.constant 0 : i32
    return %c0_i32, %c0_i32_0 : i32, i32
  }
  func.func @transform_3(%arg0: i32) -> (i32, i32) {
    %c0_i32 = arith.constant 0 : i32
    %c0_i32_0 = arith.constant 0 : i32
    %c0_i32_1 = arith.constant 0 : i32
    return %c0_i32, %c0_i32_0 : i32, i32
  }
  func.func @transform_4(%arg0: i32) -> (i32, i32) {
    %c0_i32 = arith.constant 0 : i32
    %c0_i32_0 = arith.constant 0 : i32
    %c0_i32_1 = arith.constant 0 : i32
    return %c0_i32, %c0_i32_0 : i32, i32
  }
  func.func @transform_5(%arg0: i32) -> (i32, i32) {
    %c0_i32 = arith.constant 0 : i32
    %c0_i32_0 = arith.constant 0 : i32
    return %arg0, %c0_i32 : i32, i32
  }
}

</mosaic_0001>

<llo_original>
// kernel: discriminator_forward.1
$region0: #{discriminator_forward.1}
  #allocation0 [shape = 'u32[]', space=smem, size = 0x4, offset = 0x4, fixed_abs, tag = 'smem constant byte address 0x4 - core index']
  #allocation1 [shape = 'u32[144,128]{1,0:T(1,128)}', space=vmem, size = 0x12000, scoped, tag = 'internal scratch']
  %s0 = inlined_call_operand.vmem [shape: f32[16,1024], index: 0, kind: input, shape index: {}]
  %s1 = inlined_call_operand.hbm [shape: f32[1024,128], index: 1, kind: input, shape index: {}]
  %s2 = inlined_call_operand.vmem [shape: f32[1,128], index: 2, kind: input, shape index: {}]
  %s3 = inlined_call_operand.vmem [shape: f32[128,10], index: 3, kind: input, shape index: {}]
  %s4 = inlined_call_operand.vmem [shape: f32[1,10], index: 4, kind: input, shape index: {}]
  %s5 = inlined_call_operand.hbm [shape: f32[16,10], index: 5, kind: output, shape index: {}]
  %s6 = sld [smem:[#allocation0]]
  $region34: #{discriminator_forward.1} parent=0
    _
  %s8 = ssub.s32 1, %s6
  %s9 = scalar_select 0, %s8, %s6
  $region1: #{discriminator_forward.1} parent=0
    #allocation2 [shape = 'u8[524288]{0}', space=vmem, size = 0x80000, scoped, tag = 'input window, operand 1, single buffered']
    #allocation3 [shape = 's32[1]{0}', space=sflag, size = 0x4, scoped, tag = 'scoped memory for discriminator_forward.1']
    #allocation4 [shape = 's32[1]{0}', space=sflag, size = 0x4, scoped, tag = 'scoped memory for discriminator_forward.1']
    #allocation5 [shape = 'u8[8192]{0}', space=vmem, size = 0x2000, scoped, tag = 'output window, operand 0, single buffered']
    %10 = vsyncpa [#allocation3], 0
    %11 = vsyncpa [#allocation4], 0
    // Predicated region
    $region2: #{discriminator_forward.1} parent=1 // pred_check
      _
    $region3: #{discriminator_forward.1} parent=1 // pred_check_branch
      %13 = sbr.rel (0) target = $region5
    $region4: #{discriminator_forward.1} parent=1 // pred_region
      _
    $region5: #{discriminator_forward.1} parent=1 // pred_fallthru
      _
    // Predicated region
    $region6: #{discriminator_forward.1} parent=1 // pred_check
      _
    $region7: #{discriminator_forward.1} parent=1 // pred_check_branch
      %15 = sbr.rel (0) target = $region9
    $region8: #{discriminator_forward.1} parent=1 // pred_region
      %s17 = ssub.s32 16384, 16384
      %18 = vsyncadd [#allocation3], %s17
      %s19 = sshll.u32 [#allocation2], 4
      %s20 = int_to_ptr.vmem [resolvable:$true] %s19
      %25 = dma.hbm_to_vmem [thread:$0]  %s1, 16384, %s20, [#allocation3], 128, 128, 8
    $region9: #{discriminator_forward.1} parent=1 // pred_fallthru
      _
    // Predicated region
    $region10: #{discriminator_forward.1} parent=1 // pred_check
      _
    $region11: #{discriminator_forward.1} parent=1 // pred_check_branch
      %27 = sbr.rel (0) target = $region13
    $region12: #{discriminator_forward.1} parent=1 // pred_region
      _
    $region13: #{discriminator_forward.1} parent=1 // pred_fallthru
      _
    // Predicated region
    $region14: #{discriminator_forward.1} parent=1 // pred_check
      _
    $region15: #{discriminator_forward.1} parent=1 // pred_check_branch
      %29 = sbr.rel (0) target = $region17
    $region16: #{discriminator_forward.1} parent=1 // pred_region
      _
    $region17: #{discriminator_forward.1} parent=1 // pred_fallthru
      _
    // Predicated region
    $region18: #{discriminator_forward.1} parent=1 // pred_check
      _
    $region19: #{discriminator_forward.1} parent=1 // pred_check_branch
      %31 = sbr.rel (0) target = $region21
    $region20: #{discriminator_forward.1} parent=1 // pred_region
      _
    $region21: #{discriminator_forward.1} parent=1 // pred_fallthru
      _
    // Predicated region
    $region22: #{discriminator_forward.1} parent=1 // pred_check
      _
    $region23: #{discriminator_forward.1} parent=1 // pred_check_branch
      %33 = sbr.rel (0) target = $region25
    $region24: #{discriminator_forward.1} parent=1 // pred_region
      %34 = dma.done [#allocation3], 16384
    $region25: #{discriminator_forward.1} parent=1 // pred_fallthru
      _
    %v35 = vld [vmem:[%s0] sm:$0xff]
    %v36 = vld [vmem:[%s0 + $0x8] sm:$0xff]
    %v37 = vld [vmem:[%s0 + $0x10] sm:$0xff]
    %v38 = vld [vmem:[%s0 + $0x18] sm:$0xff]
    %v39 = vld [vmem:[%s0 + $0x20] sm:$0xff]
    %v40 = vld [vmem:[%s0 + $0x28] sm:$0xff]
    %v41 = vld [vmem:[%s0 + $0x30] sm:$0xff]
    %v42 = vld [vmem:[%s0 + $0x38] sm:$0xff]
    %v43 = vld [vmem:[%s0 + $0x40] sm:$0xff]
    %v44 = vld [vmem:[%s0 + $0x48] sm:$0xff]
    %v45 = vld [vmem:[%s0 + $0x50] sm:$0xff]
    %v46 = vld [vmem:[%s0 + $0x58] sm:$0xff]
    %v47 = vld [vmem:[%s0 + $0x60] sm:$0xff]
    %v48 = vld [vmem:[%s0 + $0x68] sm:$0xff]
    %v49 = vld [vmem:[%s0 + $0x70] sm:$0xff]
    %v50 = vld [vmem:[%s0 + $0x78] sm:$0xff]
    %v51 = vld [vmem:[#allocation2] sm:$0xff]
    %v52 = vld [vmem:[#allocation2 + $0x8] sm:$0xff]
    %v53 = vld [vmem:[#allocation2 + $0x10] sm:$0xff]
    %v54 = vld [vmem:[#allocation2 + $0x18] sm:$0xff]
    %v55 = vld [vmem:[#allocation2 + $0x20] sm:$0xff]
    %v56 = vld [vmem:[#allocation2 + $0x28] sm:$0xff]
    %v57 = vld [vmem:[#allocation2 + $0x30] sm:$0xff]
    %v58 = vld [vmem:[#allocation2 + $0x38] sm:$0xff]
    %v59 = vld [vmem:[#allocation2 + $0x40] sm:$0xff]
    %v60 = vld [vmem:[#allocation2 + $0x48] sm:$0xff]
    %v61 = vld [vmem:[#allocation2 + $0x50] sm:$0xff]
    %v62 = vld [vmem:[#allocation2 + $0x58] sm:$0xff]
    %v63 = vld [vmem:[#allocation2 + $0x60] sm:$0xff]
    %v64 = vld [vmem:[#allocation2 + $0x68] sm:$0xff]
    %v65 = vld [vmem:[#allocation2 + $0x70] sm:$0xff]
    %v66 = vld [vmem:[#allocation2 + $0x78] sm:$0xff]
    %v67 = vld [vmem:[#allocation2 + $0x80] sm:$0xff]
    %v68 = vld [vmem:[#allocation2 + $0x88] sm:$0xff]
    %v69 = vld [vmem:[#allocation2 + $0x90] sm:$0xff]
    %v70 = vld [vmem:[#allocation2 + $0x98] sm:$0xff]
    %v71 = vld [vmem:[#allocation2 + $0xa0] sm:$0xff]
    %v72 = vld [vmem:[#allocation2 + $0xa8] sm:$0xff]
    %v73 = vld [vmem:[#allocation2 + $0xb0] sm:$0xff]
    %v74 = vld [vmem:[#allocation2 + $0xb8] sm:$0xff]
    %v75 = vld [vmem:[#allocation2 + $0xc0] sm:$0xff]
    %v76 = vld [vmem:[#allocation2 + $0xc8] sm:$0xff]
    %v77 = vld [vmem:[#allocation2 + $0xd0] sm:$0xff]
    %v78 = vld [vmem:[#allocation2 + $0xd8] sm:$0xff]
    %v79 = vld [vmem:[#allocation2 + $0xe0] sm:$0xff]
    %v80 = vld [vmem:[#allocation2 + $0xe8] sm:$0xff]
    %v81 = vld [vmem:[#allocation2 + $0xf0] sm:$0xff]
    %v82 = vld [vmem:[#allocation2 + $0xf8] sm:$0xff]
    %v83 = vld [vmem:[#allocation2 + $0x100] sm:$0xff]
    %v84 = vld [vmem:[#allocation2 + $0x108] sm:$0xff]
    %v85 = vld [vmem:[#allocation2 + $0x110] sm:$0xff]
    %v86 = vld [vmem:[#allocation2 + $0x118] sm:$0xff]
    %v87 = vld [vmem:[#allocation2 + $0x120] sm:$0xff]
    %v88 = vld [vmem:[#allocation2 + $0x128] sm:$0xff]
    %v89 = vld [vmem:[#allocation2 + $0x130] sm:$0xff]
    %v90 = vld [vmem:[#allocation2 + $0x138] sm:$0xff]
    %v91 = vld [vmem:[#allocation2 + $0x140] sm:$0xff]
    %v92 = vld [vmem:[#allocation2 + $0x148] sm:$0xff]
    %v93 = vld [vmem:[#allocation2 + $0x150] sm:$0xff]
    %v94 = vld [vmem:[#allocation2 + $0x158] sm:$0xff]
    %v95 = vld [vmem:[#allocation2 + $0x160] sm:$0xff]
    %v96 = vld [vmem:[#allocation2 + $0x168] sm:$0xff]
    %v97 = vld [vmem:[#allocation2 + $0x170] sm:$0xff]
    %v98 = vld [vmem:[#allocation2 + $0x178] sm:$0xff]
    %v99 = vld [vmem:[#allocation2 + $0x180] sm:$0xff]
    %v100 = vld [vmem:[#allocation2 + $0x188] sm:$0xff]
    %v101 = vld [vmem:[#allocation2 + $0x190] sm:$0xff]
    %v102 = vld [vmem:[#allocation2 + $0x198] sm:$0xff]
    %v103 = vld [vmem:[#allocation2 + $0x1a0] sm:$0xff]
    %v104 = vld [vmem:[#allocation2 + $0x1a8] sm:$0xff]
    %v105 = vld [vmem:[#allocation2 + $0x1b0] sm:$0xff]
    %v106 = vld [vmem:[#allocation2 + $0x1b8] sm:$0xff]
    %v107 = vld [vmem:[#allocation2 + $0x1c0] sm:$0xff]
    %v108 = vld [vmem:[#allocation2 + $0x1c8] sm:$0xff]
    %v109 = vld [vmem:[#allocation2 + $0x1d0] sm:$0xff]
    %v110 = vld [vmem:[#allocation2 + $0x1d8] sm:$0xff]
    %v111 = vld [vmem:[#allocation2 + $0x1e0] sm:$0xff]
    %v112 = vld [vmem:[#allocation2 + $0x1e8] sm:$0xff]
    %v113 = vld [vmem:[#allocation2 + $0x1f0] sm:$0xff]
    %v114 = vld [vmem:[#allocation2 + $0x1f8] sm:$0xff]
    %v115 = vld [vmem:[#allocation2 + $0x200] sm:$0xff]
    %v116 = vld [vmem:[#allocation2 + $0x208] sm:$0xff]
    %v117 = vld [vmem:[#allocation2 + $0x210] sm:$0xff]
    %v118 = vld [vmem:[#allocation2 + $0x218] sm:$0xff]
    %v119 = vld [vmem:[#allocation2 + $0x220] sm:$0xff]
    %v120 = vld [vmem:[#allocation2 + $0x228] sm:$0xff]
    %v121 = vld [vmem:[#allocation2 + $0x230] sm:$0xff]
    %v122 = vld [vmem:[#allocation2 + $0x238] sm:$0xff]
    %v123 = vld [vmem:[#allocation2 + $0x240] sm:$0xff]
    %v124 = vld [vmem:[#allocation2 + $0x248] sm:$0xff]
    %v125 = vld [vmem:[#allocation2 + $0x250] sm:$0xff]
    %v126 = vld [vmem:[#allocation2 + $0x258] sm:$0xff]
    %v127 = vld [vmem:[#allocation2 + $0x260] sm:$0xff]
    %v128 = vld [vmem:[#allocation2 + $0x268] sm:$0xff]
    %v129 = vld [vmem:[#allocation2 + $0x270] sm:$0xff]
    %v130 = vld [vmem:[#allocation2 + $0x278] sm:$0xff]
    %v131 = vld [vmem:[#allocation2 + $0x280] sm:$0xff]
    %v132 = vld [vmem:[#allocation2 + $0x288] sm:$0xff]
    %v133 = vld [vmem:[#allocation2 + $0x290] sm:$0xff]
    %v134 = vld [vmem:[#allocation2 + $0x298] sm:$0xff]
    %v135 = vld [vmem:[#allocation2 + $0x2a0] sm:$0xff]
    %v136 = vld [vmem:[#allocation2 + $0x2a8] sm:$0xff]
    %v137 = vld [vmem:[#allocation2 + $0x2b0] sm:$0xff]
    %v138 = vld [vmem:[#allocation2 + $0x2b8] sm:$0xff]
    %v139 = vld [vmem:[#allocation2 + $0x2c0] sm:$0xff]
    %v140 = vld [vmem:[#allocation2 + $0x2c8] sm:$0xff]
    %v141 = vld [vmem:[#allocation2 + $0x2d0] sm:$0xff]
    %v142 = vld [vmem:[#allocation2 + $0x2d8] sm:$0xff]
    %v143 = vld [vmem:[#allocation2 + $0x2e0] sm:$0xff]
    %v144 = vld [vmem:[#allocation2 + $0x2e8] sm:$0xff]
    %v145 = vld [vmem:[#allocation2 + $0x2f0] sm:$0xff]
    %v146 = vld [vmem:[#allocation2 + $0x2f8] sm:$0xff]
    %v147 = vld [vmem:[#allocation2 + $0x300] sm:$0xff]
    %v148 = vld [vmem:[#allocation2 + $0x308] sm:$0xff]
    %v149 = vld [vmem:[#allocation2 + $0x310] sm:$0xff]
    %v150 = vld [vmem:[#allocation2 + $0x318] sm:$0xff]
    %v151 = vld [vmem:[#allocation2 + $0x320] sm:$0xff]
    %v152 = vld [vmem:[#allocation2 + $0x328] sm:$0xff]
    %v153 = vld [vmem:[#allocation2 + $0x330] sm:$0xff]
    %v154 = vld [vmem:[#allocation2 + $0x338] sm:$0xff]
    %v155 = vld [vmem:[#allocation2 + $0x340] sm:$0xff]
    %v156 = vld [vmem:[#allocation2 + $0x348] sm:$0xff]
    %v157 = vld [vmem:[#allocation2 + $0x350] sm:$0xff]
    %v158 = vld [vmem:[#allocation2 + $0x358] sm:$0xff]
    %v159 = vld [vmem:[#allocation2 + $0x360] sm:$0xff]
    %v160 = vld [vmem:[#allocation2 + $0x368] sm:$0xff]
    %v161 = vld [vmem:[#allocation2 + $0x370] sm:$0xff]
    %v162 = vld [vmem:[#allocation2 + $0x378] sm:$0xff]
    %v163 = vld [vmem:[#allocation2 + $0x380] sm:$0xff]
    %v164 = vld [vmem:[#allocation2 + $0x388] sm:$0xff]
    %v165 = vld [vmem:[#allocation2 + $0x390] sm:$0xff]
    %v166 = vld [vmem:[#allocation2 + $0x398] sm:$0xff]
    %v167 = vld [vmem:[#allocation2 + $0x3a0] sm:$0xff]
    %v168 = vld [vmem:[#allocation2 + $0x3a8] sm:$0xff]
    %v169 = vld [vmem:[#allocation2 + $0x3b0] sm:$0xff]
    %v170 = vld [vmem:[#allocation2 + $0x3b8] sm:$0xff]
    %v171 = vld [vmem:[#allocation2 + $0x3c0] sm:$0xff]
    %v172 = vld [vmem:[#allocation2 + $0x3c8] sm:$0xff]
    %v173 = vld [vmem:[#allocation2 + $0x3d0] sm:$0xff]
    %v174 = vld [vmem:[#allocation2 + $0x3d8] sm:$0xff]
    %v175 = vld [vmem:[#allocation2 + $0x3e0] sm:$0xff]
    %v176 = vld [vmem:[#allocation2 + $0x3e8] sm:$0xff]
    %v177 = vld [vmem:[#allocation2 + $0x3f0] sm:$0xff]
    %v178 = vld [vmem:[#allocation2 + $0x3f8] sm:$0xff]
    %v179 = vld [vmem:[%s2] sm:$0x1]
    %v181 = vlaneseq
    %v182 = vshrl.u32 %v181, 7
    %v183 = vsub.s32 0, %v182
    %v184 = vrot.slane %v179, %v183
    %186 = vmatprep.subr.mxu0 0.0
    %187 = vmatpush1.msra.mxu0 %v51
    %188 = vmatprep.subr.mxu0 0.0
    %189 = vmatpush1.msra.mxu0 %v52
    %190 = vmatprep.subr.mxu0 0.0
    %191 = vmatpush1.msra.mxu0 %v53
    %192 = vmatprep.subr.mxu0 0.0
    %193 = vmatpush1.msra.mxu0 %v54
    %194 = vmatprep.subr.mxu0 0.0
    %195 = vmatpush1.msra.mxu0 %v55
    %196 = vmatprep.subr.mxu0 0.0
    %197 = vmatpush1.msra.mxu0 %v56
    %198 = vmatprep.subr.mxu0 0.0
    %199 = vmatpush1.msra.mxu0 %v57
    %200 = vmatprep.subr.mxu0 0.0
    %201 = vmatpush1.msra.mxu0 %v58
    %202 = vmatprep.subr.mxu0 0.0
    %203 = vmatpush1.msra.mxu0 %v59
    %204 = vmatprep.subr.mxu0 0.0
    %205 = vmatpush1.msra.mxu0 %v60
    %206 = vmatprep.subr.mxu0 0.0
    %207 = vmatpush1.msra.mxu0 %v61
    %208 = vmatprep.subr.mxu0 0.0
    %209 = vmatpush1.msra.mxu0 %v62
    %210 = vmatprep.subr.mxu0 0.0
    %211 = vmatpush1.msra.mxu0 %v63
    %212 = vmatprep.subr.mxu0 0.0
    %213 = vmatpush1.msra.mxu0 %v64
    %214 = vmatprep.subr.mxu0 0.0
    %215 = vmatpush1.msra.mxu0 %v65
    %216 = vmatprep.subr.mxu0 0.0
    %217 = vmatpush1.msra.mxu0 %v66
    %218 = vmatprep.subr.mxu0 0.0
    %219 = vmatpush1.msra.mxu0 %v67
    %220 = vmatprep.subr.mxu0 0.0
    %221 = vmatpush1.msra.mxu0 %v68
    %222 = vmatprep.subr.mxu0 0.0
    %223 = vmatpush1.msra.mxu0 %v69
    %224 = vmatprep.subr.mxu0 0.0
    %225 = vmatpush1.msra.mxu0 %v70
    %226 = vmatprep.subr.mxu0 0.0
    %227 = vmatpush1.msra.mxu0 %v71
    %228 = vmatprep.subr.mxu0 0.0
    %229 = vmatpush1.msra.mxu0 %v72
    %230 = vmatprep.subr.mxu0 0.0
    %231 = vmatpush1.msra.mxu0 %v73
    %232 = vmatprep.subr.mxu0 0.0
    %233 = vmatpush1.msra.mxu0 %v74
    %234 = vmatprep.subr.mxu0 0.0
    %235 = vmatpush1.msra.mxu0 %v75
    %236 = vmatprep.subr.mxu0 0.0
    %237 = vmatpush1.msra.mxu0 %v76
    %238 = vmatprep.subr.mxu0 0.0
    %239 = vmatpush1.msra.mxu0 %v77
    %240 = vmatprep.subr.mxu0 0.0
    %241 = vmatpush1.msra.mxu0 %v78
    %242 = vmatprep.subr.mxu0 0.0
    %243 = vmatpush1.msra.mxu0 %v79
    %244 = vmatprep.subr.mxu0 0.0
    %245 = vmatpush1.msra.mxu0 %v80
    %246 = vmatprep.subr.mxu0 0.0
    %247 = vmatpush1.msra.mxu0 %v81
    %248 = vmatprep.subr.mxu0 0.0
    %249 = vmatpush1.msra.mxu0 %v82
    %250 = vmatprep.mubr.f32.mxu0 %v36
    %251 = vmatmul.mubr.f32.gmra.mrb[0].mxu0 %v35
    %v252 = vpop.f32.mrb[0].mxu0
    %v253 = vadd.f32 %v184, %v252
    %v254 = vpop.f32.mrb[0].mxu0
    %255 = vmatprep.mubr.f32.mxu0 %v44
    %256 = vmatmul.mubr.f32.gmra.mrb[0].mxu0 %v43
    %v257 = vpop.f32.mrb[0].mxu0
    %v258 = vadd.f32 %v184, %v257
    %v259 = vpop.f32.mrb[0].mxu0
    %260 = vdwg.mxu0
    %261 = vmatprep.subr.mxu0 0.0
    %262 = vmatpush1.msra.mxu0 %v83
    %263 = vmatprep.subr.mxu0 0.0
    %264 = vmatpush1.msra.mxu0 %v84
    %265 = vmatprep.subr.mxu0 0.0
    %266 = vmatpush1.msra.mxu0 %v85
    %267 = vmatprep.subr.mxu0 0.0
    %268 = vmatpush1.msra.mxu0 %v86
    %269 = vmatprep.subr.mxu0 0.0
    %270 = vmatpush1.msra.mxu0 %v87
    %271 = vmatprep.subr.mxu0 0.0
    %272 = vmatpush1.msra.mxu0 %v88
    %273 = vmatprep.subr.mxu0 0.0
    %274 = vmatpush1.msra.mxu0 %v89
    %275 = vmatprep.subr.mxu0 0.0
    %276 = vmatpush1.msra.mxu0 %v90
    %277 = vmatprep.subr.mxu0 0.0
    %278 = vmatpush1.msra.mxu0 %v91
    %279 = vmatprep.subr.mxu0 0.0
    %280 = vmatpush1.msra.mxu0 %v92
    %281 = vmatprep.subr.mxu0 0.0
    %282 = vmatpush1.msra.mxu0 %v93
    %283 = vmatprep.subr.mxu0 0.0
    %284 = vmatpush1.msra.mxu0 %v94
    %285 = vmatprep.subr.mxu0 0.0
    %286 = vmatpush1.msra.mxu0 %v95
    %287 = vmatprep.subr.mxu0 0.0
    %288 = vmatpush1.msra.mxu0 %v96
    %289 = vmatprep.subr.mxu0 0.0
    %290 = vmatpush1.msra.mxu0 %v97
    %291 = vmatprep.subr.mxu0 0.0
    %292 = vmatpush1.msra.mxu0 %v98
    %293 = vmatprep.subr.mxu0 0.0
    %294 = vmatpush1.msra.mxu0 %v99
    %295 = vmatprep.subr.mxu0 0.0
    %296 = vmatpush1.msra.mxu0 %v100
    %297 = vmatprep.subr.mxu0 0.0
    %298 = vmatpush1.msra.mxu0 %v101
    %299 = vmatprep.subr.mxu0 0.0
    %300 = vmatpush1.msra.mxu0 %v102
    %301 = vmatprep.subr.mxu0 0.0
    %302 = vmatpush1.msra.mxu0 %v103
    %303 = vmatprep.subr.mxu0 0.0
    %304 = vmatpush1.msra.mxu0 %v104
    %305 = vmatprep.subr.mxu0 0.0
    %306 = vmatpush1.msra.mxu0 %v105
    %307 = vmatprep.subr.mxu0 0.0
    %308 = vmatpush1.msra.mxu0 %v106
    %309 = vmatprep.subr.mxu0 0.0
    %310 = vmatpush1.msra.mxu0 %v107
    %311 = vmatprep.subr.mxu0 0.0
    %312 = vmatpush1.msra.mxu0 %v108
    %313 = vmatprep.subr.mxu0 0.0
    %314 = vmatpush1.msra.mxu0 %v109
    %315 = vmatprep.subr.mxu0 0.0
    %316 = vmatpush1.msra.mxu0 %v110
    %317 = vmatprep.subr.mxu0 0.0
    %318 = vmatpush1.msra.mxu0 %v111
    %319 = vmatprep.subr.mxu0 0.0
    %320 = vmatpush1.msra.mxu0 %v112
    %321 = vmatprep.subr.mxu0 0.0
    %322 = vmatpush1.msra.mxu0 %v113
    %323 = vmatprep.subr.mxu0 0.0
    %324 = vmatpush1.msra.mxu0 %v114
    %325 = vmatprep.mubr.f32.mxu0 %v38
    %326 = vmatmul.mubr.f32.gmra.mrb[0].mxu0 %v37
    %v327 = vpop.f32.mrb[0].mxu0
    %v328 = vadd.f32 %v253, %v327
    %v329 = vpop.f32.mrb[0].mxu0
    %330 = vmatprep.mubr.f32.mxu0 %v46
    %331 = vmatmul.mubr.f32.gmra.mrb[0].mxu0 %v45
    %v332 = vpop.f32.mrb[0].mxu0
    %v333 = vadd.f32 %v258, %v332
    %v334 = vpop.f32.mrb[0].mxu0
    %335 = vdwg.mxu0
    %336 = vmatprep.subr.mxu0 0.0
    %337 = vmatpush1.msra.mxu0 %v115
    %338 = vmatprep.subr.mxu0 0.0
    %339 = vmatpush1.msra.mxu0 %v116
    %340 = vmatprep.subr.mxu0 0.0
    %341 = vmatpush1.msra.mxu0 %v117
    %342 = vmatprep.subr.mxu0 0.0
    %343 = vmatpush1.msra.mxu0 %v118
    %344 = vmatprep.subr.mxu0 0.0
    %345 = vmatpush1.msra.mxu0 %v119
    %346 = vmatprep.subr.mxu0 0.0
    %347 = vmatpush1.msra.mxu0 %v120
    %348 = vmatprep.subr.mxu0 0.0
    %349 = vmatpush1.msra.mxu0 %v121
    %350 = vmatprep.subr.mxu0 0.0
    %351 = vmatpush1.msra.mxu0 %v122
    %352 = vmatprep.subr.mxu0 0.0
    %353 = vmatpush1.msra.mxu0 %v123
    %354 = vmatprep.subr.mxu0 0.0
    %355 = vmatpush1.msra.mxu0 %v124
    %356 = vmatprep.subr.mxu0 0.0
    %357 = vmatpush1.msra.mxu0 %v125
    %358 = vmatprep.subr.mxu0 0.0
    %359 = vmatpush1.msra.mxu0 %v126
    %360 = vmatprep.subr.mxu0 0.0
    %361 = vmatpush1.msra.mxu0 %v127
    %362 = vmatprep.subr.mxu0 0.0
    %363 = vmatpush1.msra.mxu0 %v128
    %364 = vmatprep.subr.mxu0 0.0
    %365 = vmatpush1.msra.mxu0 %v129
    %366 = vmatprep.subr.mxu0 0.0
    %367 = vmatpush1.msra.mxu0 %v130
    %368 = vmatprep.subr.mxu0 0.0
    %369 = vmatpush1.msra.mxu0 %v131
    %370 = vmatprep.subr.mxu0 0.0
    %371 = vmatpush1.msra.mxu0 %v132
    %372 = vmatprep.subr.mxu0 0.0
    %373 = vmatpush1.msra.mxu0 %v133
    %374 = vmatprep.subr.mxu0 0.0
    %375 = vmatpush1.msra.mxu0 %v134
    %376 = vmatprep.subr.mxu0 0.0
    %377 = vmatpush1.msra.mxu0 %v135
    %378 = vmatprep.subr.mxu0 0.0
    %379 = vmatpush1.msra.mxu0 %v136
    %380 = vmatprep.subr.mxu0 0.0
    %381 = vmatpush1.msra.mxu0 %v137
    %382 = vmatprep.subr.mxu0 0.0
    %383 = vmatpush1.msra.mxu0 %v138
    %384 = vmatprep.subr.mxu0 0.0
    %385 = vmatpush1.msra.mxu0 %v139
    %386 = vmatprep.subr.mxu0 0.0
    %387 = vmatpush1.msra.mxu0 %v140
    %388 = vmatprep.subr.mxu0 0.0
    %389 = vmatpush1.msra.mxu0 %v141
    %390 = vmatprep.subr.mxu0 0.0
    %391 = vmatpush1.msra.mxu0 %v142
    %392 = vmatprep.subr.mxu0 0.0
    %393 = vmatpush1.msra.mxu0 %v143
    %394 = vmatprep.subr.mxu0 0.0
    %395 = vmatpush1.msra.mxu0 %v144
    %396 = vmatprep.subr.mxu0 0.0
    %397 = vmatpush1.msra.mxu0 %v145
    %398 = vmatprep.subr.mxu0 0.0
    %399 = vmatpush1.msra.mxu0 %v146
    %400 = vmatprep.mubr.f32.mxu0 %v40
    %401 = vmatmul.mubr.f32.gmra.mrb[0].mxu0 %v39
    %v402 = vpop.f32.mrb[0].mxu0
    %v403 = vadd.f32 %v328, %v402
    %v404 = vpop.f32.mrb[0].mxu0
    %405 = vmatprep.mubr.f32.mxu0 %v48
    %406 = vmatmul.mubr.f32.gmra.mrb[0].mxu0 %v47
    %v407 = vpop.f32.mrb[0].mxu0
    %v408 = vadd.f32 %v333, %v407
    %v409 = vpop.f32.mrb[0].mxu0
    %410 = vdwg.mxu0
    %411 = vmatprep.subr.mxu0 0.0
    %412 = vmatpush1.msra.mxu0 %v147
    %413 = vmatprep.subr.mxu0 0.0
    %414 = vmatpush1.msra.mxu0 %v148
    %415 = vmatprep.subr.mxu0 0.0
    %416 = vmatpush1.msra.mxu0 %v149
    %417 = vmatprep.subr.mxu0 0.0
    %418 = vmatpush1.msra.mxu0 %v150
    %419 = vmatprep.subr.mxu0 0.0
    %420 = vmatpush1.msra.mxu0 %v151
    %421 = vmatprep.subr.mxu0 0.0
    %422 = vmatpush1.msra.mxu0 %v152
    %423 = vmatprep.subr.mxu0 0.0
    %424 = vmatpush1.msra.mxu0 %v153
    %425 = vmatprep.subr.mxu0 0.0
    %426 = vmatpush1.msra.mxu0 %v154
    %427 = vmatprep.subr.mxu0 0.0
    %428 = vmatpush1.msra.mxu0 %v155
    %429 = vmatprep.subr.mxu0 0.0
    %430 = vmatpush1.msra.mxu0 %v156
    %431 = vmatprep.subr.mxu0 0.0
    %432 = vmatpush1.msra.mxu0 %v157
    %433 = vmatprep.subr.mxu0 0.0
    %434 = vmatpush1.msra.mxu0 %v158
    %435 = vmatprep.subr.mxu0 0.0
    %436 = vmatpush1.msra.mxu0 %v159
    %437 = vmatprep.subr.mxu0 0.0
    %438 = vmatpush1.msra.mxu0 %v160
    %439 = vmatprep.subr.mxu0 0.0
    %440 = vmatpush1.msra.mxu0 %v161
    %441 = vmatprep.subr.mxu0 0.0
    %442 = vmatpush1.msra.mxu0 %v162
    %443 = vmatprep.subr.mxu0 0.0
    %444 = vmatpush1.msra.mxu0 %v163
    %445 = vmatprep.subr.mxu0 0.0
    %446 = vmatpush1.msra.mxu0 %v164
    %447 = vmatprep.subr.mxu0 0.0
    %448 = vmatpush1.msra.mxu0 %v165
    %449 = vmatprep.subr.mxu0 0.0
    %450 = vmatpush1.msra.mxu0 %v166
    %451 = vmatprep.subr.mxu0 0.0
    %452 = vmatpush1.msra.mxu0 %v167
    %453 = vmatprep.subr.mxu0 0.0
    %454 = vmatpush1.msra.mxu0 %v168
    %455 = vmatprep.subr.mxu0 0.0
    %456 = vmatpush1.msra.mxu0 %v169
    %457 = vmatprep.subr.mxu0 0.0
    %458 = vmatpush1.msra.mxu0 %v170
    %459 = vmatprep.subr.mxu0 0.0
    %460 = vmatpush1.msra.mxu0 %v171
    %461 = vmatprep.subr.mxu0 0.0
    %462 = vmatpush1.msra.mxu0 %v172
    %463 = vmatprep.subr.mxu0 0.0
    %464 = vmatpush1.msra.mxu0 %v173
    %465 = vmatprep.subr.mxu0 0.0
    %466 = vmatpush1.msra.mxu0 %v174
    %467 = vmatprep.subr.mxu0 0.0
    %468 = vmatpush1.msra.mxu0 %v175
    %469 = vmatprep.subr.mxu0 0.0
    %470 = vmatpush1.msra.mxu0 %v176
    %471 = vmatprep.subr.mxu0 0.0
    %472 = vmatpush1.msra.mxu0 %v177
    %473 = vmatprep.subr.mxu0 0.0
    %474 = vmatpush1.msra.mxu0 %v178
    %475 = vmatprep.mubr.f32.mxu0 %v42
    %476 = vmatmul.mubr.f32.gmra.mrb[0].mxu0 %v41
    %v477 = vpop.f32.mrb[0].mxu0
    %v478 = vadd.f32 %v403, %v477
    %v479 = vpop.f32.mrb[0].mxu0
    %480 = vmatprep.mubr.f32.mxu0 %v50
    %481 = vmatmul.mubr.f32.gmra.mrb[0].mxu0 %v49
    %v482 = vpop.f32.mrb[0].mxu0
    %v483 = vadd.f32 %v408, %v482
    %v484 = vpop.f32.mrb[0].mxu0
    %485 = vdwg.mxu0
    %v486 = vmax.f32 %v478, 0.0
    %v487 = vmax.f32 %v483, 0.0
    %v488 = vld [vmem:[%s3] sm:$0xff]
    %v489 = vld [vmem:[%s3 + $0x8] sm:$0xff]
    %v490 = vld [vmem:[%s3 + $0x10] sm:$0xff]
    %v491 = vld [vmem:[%s3 + $0x18] sm:$0xff]
    %v492 = vld [vmem:[%s3 + $0x20] sm:$0xff]
    %v493 = vld [vmem:[%s3 + $0x28] sm:$0xff]
    %v494 = vld [vmem:[%s3 + $0x30] sm:$0xff]
    %v495 = vld [vmem:[%s3 + $0x38] sm:$0xff]
    %v496 = vld [vmem:[%s3 + $0x40] sm:$0xff]
    %v497 = vld [vmem:[%s3 + $0x48] sm:$0xff]
    %v498 = vld [vmem:[%s3 + $0x50] sm:$0xff]
    %v499 = vld [vmem:[%s3 + $0x58] sm:$0xff]
    %v500 = vld [vmem:[%s3 + $0x60] sm:$0xff]
    %v501 = vld [vmem:[%s3 + $0x68] sm:$0xff]
    %v502 = vld [vmem:[%s3 + $0x70] sm:$0xff]
    %v503 = vld [vmem:[%s3 + $0x78] sm:$0xff]
    %v504 = vld [vmem:[%s4] sm:$0x1]
    %v506 = vlaneseq
    %v507 = vshrl.u32 %v506, 7
    %v508 = vsub.s32 0, %v507
    %v509 = vrot.slane %v504, %v508
    %511 = vmatprep.subr.mxu0 0.0
    %512 = vmatpush1.msra.mxu0 %v488
    %513 = vmatprep.subr.mxu0 0.0
    %514 = vmatpush1.msra.mxu0 %v489
    %515 = vmatprep.subr.mxu0 0.0
    %516 = vmatpush1.msra.mxu0 %v490
    %517 = vmatprep.subr.mxu0 0.0
    %518 = vmatpush1.msra.mxu0 %v491
    %519 = vmatprep.subr.mxu0 0.0
    %520 = vmatpush1.msra.mxu0 %v492
    %521 = vmatprep.subr.mxu0 0.0
    %522 = vmatpush1.msra.mxu0 %v493
    %523 = vmatprep.subr.mxu0 0.0
    %524 = vmatpush1.msra.mxu0 %v494
    %525 = vmatprep.subr.mxu0 0.0
    %526 = vmatpush1.msra.mxu0 %v495
    %527 = vmatprep.subr.mxu0 0.0
    %528 = vmatpush1.msra.mxu0 %v496
    %529 = vmatprep.subr.mxu0 0.0
    %530 = vmatpush1.msra.mxu0 %v497
    %531 = vmatprep.subr.mxu0 0.0
    %532 = vmatpush1.msra.mxu0 %v498
    %533 = vmatprep.subr.mxu0 0.0
    %534 = vmatpush1.msra.mxu0 %v499
    %535 = vmatprep.subr.mxu0 0.0
    %536 = vmatpush1.msra.mxu0 %v500
    %537 = vmatprep.subr.mxu0 0.0
    %538 = vmatpush1.msra.mxu0 %v501
    %539 = vmatprep.subr.mxu0 0.0
    %540 = vmatpush1.msra.mxu0 %v502
    %541 = vmatprep.subr.mxu0 0.0
    %542 = vmatpush1.msra.mxu0 %v503
    %543 = vmatprep.subr.mxu0 0.0
    %544 = vmatpush1.msra.mxu0 0.0
    %545 = vmatprep.subr.mxu0 0.0
    %546 = vmatpush1.msra.mxu0 0.0
    %547 = vmatprep.subr.mxu0 0.0
    %548 = vmatpush1.msra.mxu0 0.0
    %549 = vmatprep.subr.mxu0 0.0
    %550 = vmatpush1.msra.mxu0 0.0
    %551 = vmatprep.subr.mxu0 0.0
    %552 = vmatpush1.msra.mxu0 0.0
    %553 = vmatprep.subr.mxu0 0.0
    %554 = vmatpush1.msra.mxu0 0.0
    %555 = vmatprep.subr.mxu0 0.0
    %556 = vmatpush1.msra.mxu0 0.0
    %557 = vmatprep.subr.mxu0 0.0
    %558 = vmatpush1.msra.mxu0 0.0
    %559 = vmatprep.subr.mxu0 0.0
    %560 = vmatpush1.msra.mxu0 0.0
    %561 = vmatprep.subr.mxu0 0.0
    %562 = vmatpush1.msra.mxu0 0.0
    %563 = vmatprep.subr.mxu0 0.0
    %564 = vmatpush1.msra.mxu0 0.0
    %565 = vmatprep.subr.mxu0 0.0
    %566 = vmatpush1.msra.mxu0 0.0
    %567 = vmatprep.subr.mxu0 0.0
    %568 = vmatpush1.msra.mxu0 0.0
    %569 = vmatprep.subr.mxu0 0.0
    %570 = vmatpush1.msra.mxu0 0.0
    %571 = vmatprep.subr.mxu0 0.0
    %572 = vmatpush1.msra.mxu0 0.0
    %573 = vmatprep.subr.mxu0 0.0
    %574 = vmatpush1.msra.mxu0 0.0
    %575 = vmatprep.mubr.f32.mxu0 0.0
    %576 = vmatmul.mubr.f32.gmra.mrb[0].mxu0 %v486
    %v577 = vpop.f32.mrb[0].mxu0
    %v578 = vadd.f32 %v509, %v577
    %v579 = vpop.f32.mrb[0].mxu0
    %580 = vmatprep.mubr.f32.mxu0 0.0
    %581 = vmatmul.mubr.f32.gmra.mrb[0].mxu0 %v487
    %v582 = vpop.f32.mrb[0].mxu0
    %v583 = vadd.f32 %v509, %v582
    %v584 = vpop.f32.mrb[0].mxu0
    %585 = vdwg.mxu0
    %vm586 = vcmask 80896
    %587 = vst.msk [vmem:[#allocation5] sm:$0xff] %vm586, %v578
    %588 = vst.msk [vmem:[#allocation5 + $0x8] sm:$0xff] %vm586, %v583
    // Predicated region
    $region26: #{discriminator_forward.1} parent=1 // pred_check
      _
    $region27: #{discriminator_forward.1} parent=1 // pred_check_branch
      %590 = sbr.rel (0) target = $region29
    $region28: #{discriminator_forward.1} parent=1 // pred_region
      %s592 = ssub.s32 256, 256
      %593 = vsyncadd [#allocation4], %s592
      %s594 = sshll.u32 [#allocation5], 4
      %s595 = int_to_ptr.vmem [resolvable:$true] %s594
      %600 = dma.vmem_to_hbm [thread:$0]  %s595, 256, %s5, [#allocation4], 128, 128, 8
    $region29: #{discriminator_forward.1} parent=1 // pred_fallthru
      _
    // Predicated region
    $region30: #{discriminator_forward.1} parent=1 // pred_check
      _
    $region31: #{discriminator_forward.1} parent=1 // pred_check_branch
      %602 = sbr.rel (0) target = $region33
    $region32: #{discriminator_forward.1} parent=1 // pred_region
      %603 = dma.done [#allocation4], 256
    $region33: #{discriminator_forward.1} parent=1 // pred_fallthru
      _
    %604 = vsyncpa [#allocation3], 1
    %605 = vsyncpa [#allocation4], 1

</llo_original>
